<compile_context>
chip_gen: v6e
topology: v6e:2x2x1
jax: 0.10.0
libtpu: 0.0.40
codegen_flags: <defaults>
</compile_context>

<pallas_src>
import functools

import jax
import jax.numpy as jnp
from jax import lax
from jax.experimental import pallas as pl
from jax.experimental.pallas import tpu as pltpu


def _round_up(x, m):
    return ((x + m - 1) // m) * m


def _cdiv(a, b):
    return (a + b - 1) // b


def _sp_kernel(s_ref, t_ref, o_ref, gs_ref, gt_ref, *, batch):
    """Accumulate G_s = S @ S^T and G_t = T @ T^T over feature chunks,
    then finalize to the SP loss.

    s_ref  : (Bpad, tk_s) chunk of the student rows.
    t_ref  : (Bpad, tk_t) chunk of the teacher rows.
    o_ref  : (1, 1) SMEM scalar output (the loss).
    gs_ref : (Bpad, Bpad) f32 VMEM Gram accumulator (student).
    gt_ref : (Bpad, Bpad) f32 VMEM Gram accumulator (teacher).
    """
    k = pl.program_id(0)

    s = s_ref[...]
    t = t_ref[...]
    # Contract the lane (feature) axis with itself: no in-kernel transpose.
    gs_part = lax.dot_general(
        s, s, dimension_numbers=(((1,), (1,)), ((), ())),
        preferred_element_type=jnp.float32)
    gt_part = lax.dot_general(
        t, t, dimension_numbers=(((1,), (1,)), ((), ())),
        preferred_element_type=jnp.float32)

    @pl.when(k == 0)
    def _():
        gs_ref[...] = gs_part
        gt_ref[...] = gt_part

    @pl.when(k > 0)
    def _():
        gs_ref[...] += gs_part
        gt_ref[...] += gt_part

    @pl.when(k == pl.num_programs(0) - 1)
    def _():
        gs = gs_ref[...]
        gt = gt_ref[...]
        # F.normalize(p=2, dim=1): x / max(||x||, 1e-12) == x * rsqrt(max(ss, 1e-24)).
        # Zero-padded batch rows normalize to exactly 0 in both Grams, so the
        # padded region contributes nothing to the squared difference.
        gs_n = gs * lax.rsqrt(
            jnp.maximum(jnp.sum(gs * gs, axis=1, keepdims=True), 1e-24))
        gt_n = gt * lax.rsqrt(
            jnp.maximum(jnp.sum(gt * gt, axis=1, keepdims=True), 1e-24))
        diff = gs_n - gt_n
        # mse_loss: mean over the true B x B elements.
        o_ref[0, 0] = jnp.sum(diff * diff) / float(batch * batch)


def sp_loss(fm_s, fm_t):
    """Similarity-Preserving KD loss.  fm_s, fm_t: (B, C, H, W); C/H/W may differ."""
    assert fm_s.shape[0] == fm_t.shape[0], "batch sizes must match"
    B = fm_s.shape[0]

    # Keep bf16 inputs in bf16 (MXU-native, f32 accumulation); otherwise f32.
    if fm_s.dtype == jnp.bfloat16 and fm_t.dtype == jnp.bfloat16:
        cdtype = jnp.bfloat16
    else:
        cdtype = jnp.float32

    s = fm_s.reshape(B, -1).astype(cdtype)
    t = fm_t.reshape(B, -1).astype(cdtype)
    D_s, D_t = s.shape[1], t.shape[1]

    Bpad = _round_up(max(B, 8), 8)
    itemsize = jnp.dtype(cdtype).itemsize

    # ---- VMEM accounting (chip-aware) ----------------------------------
    try:
        vmem_cap = int(pltpu.get_tpu_info().vmem_capacity_bytes)
    except Exception:
        vmem_cap = 64 << 20  # conservative default (v7x-sized)

    acc_bytes = 2 * Bpad * Bpad * 4            # the two f32 Gram scratches
    finalize_bytes = 8 * Bpad * Bpad * 4       # headroom for finalize temporaries
    usable = max((vmem_cap * 3) // 4, 24 << 20)
    pipeline_budget = max(usable - acc_bytes - finalize_bytes, 4 << 20)

    # Total (student + teacher) feature columns streamable per grid step,
    # assuming double-buffered input pipelines.
    cols_cap = max(1024, (pipeline_budget // (2 * Bpad * itemsize)) // 128 * 128)

    if D_s + D_t <= cols_cap:
        # Single grid step: block == full array dims, no feature padding.
        grid_k = 1
        tk_s, tk_t = D_s, D_t
    else:
        grid_k = _cdiv(D_s + D_t, cols_cap)
        tk_s = _round_up(max(_cdiv(D_s, grid_k), 1), 512)
        tk_t = _round_up(max(_cdiv(D_t, grid_k), 1), 512)

    Ds_pad, Dt_pad = grid_k * tk_s, grid_k * tk_t

    def _maybe_pad(a, rows, cols):
        pr, pc = rows - a.shape[0], cols - a.shape[1]
        if pr or pc:
            return jnp.pad(a, ((0, pr), (0, pc)))
        return a

    s = _maybe_pad(s, Bpad, Ds_pad)
    t = _maybe_pad(t, Bpad, Dt_pad)

    pipeline_bytes = 2 * Bpad * (tk_s + tk_t) * itemsize
    vmem_limit = pipeline_bytes + acc_bytes + finalize_bytes + (4 << 20)
    vmem_limit = int(max(min(vmem_limit, vmem_cap), 16 << 20))

    kernel = functools.partial(_sp_kernel, batch=B)

    out = pl.pallas_call(
        kernel,
        out_shape=jax.ShapeDtypeStruct((1, 1), jnp.float32),
        grid_spec=pltpu.PrefetchScalarGridSpec(
            num_scalar_prefetch=0,
            grid=(grid_k,),
            in_specs=[
                pl.BlockSpec((Bpad, tk_s), lambda k: (0, k)),
                pl.BlockSpec((Bpad, tk_t), lambda k: (0, k)),
            ],
            out_specs=pl.BlockSpec(
                (1, 1), lambda k: (0, 0), memory_space=pltpu.SMEM
            ),
            scratch_shapes=[
                pltpu.VMEM((Bpad, Bpad), jnp.float32),
                pltpu.VMEM((Bpad, Bpad), jnp.float32),
            ],
        ),
        compiler_params=pltpu.CompilerParams(
            dimension_semantics=("arbitrary",),
            vmem_limit_bytes=vmem_limit,
        ),
    )(s, t)
    return out[0, 0]


def _sp_loss_ref(fm_s, fm_t):
    """Pure-JAX reference mirroring the PyTorch module."""
    B = fm_s.shape[0]
    s = fm_s.reshape(B, -1).astype(jnp.float32)
    t = fm_t.reshape(B, -1).astype(jnp.float32)
    g_s = s @ s.T
    g_t = t @ t.T
    g_s = g_s / jnp.maximum(jnp.linalg.norm(g_s, axis=1, keepdims=True), 1e-12)
    g_t = g_t / jnp.maximum(jnp.linalg.norm(g_t, axis=1, keepdims=True), 1e-12)
    return jnp.mean((g_s - g_t) ** 2)


if __name__ == "__main__":
    key = jax.random.PRNGKey(0)
    k1, k2 = jax.random.split(key)
    # Student and teacher feature maps (teacher has more channels).
    fm_s = jax.random.normal(k1, (2, 4, 16, 16), dtype=jnp.float32)
    fm_t = jax.random.normal(k2, (2, 8, 16, 16), dtype=jnp.float32)

    loss = jax.block_until_ready(sp_loss(fm_s, fm_t))
    ref = jax.block_until_ready(_sp_loss_ref(fm_s, fm_t))

    assert jnp.isfinite(loss), "non-finite loss"
    assert abs(float(loss) - float(ref)) < 1e-5, (float(loss), float(ref))
    print("KERNEL_OK")
</pallas_src>

<mosaic_0001>
module attributes {stable_mosaic.version = 11 : i64} {
  func.func @_sp_kernel(%arg0: i32, %arg1: memref<8x1024xf32, #tpu.memory_space<vmem>>, %arg2: memref<8x2048xf32, #tpu.memory_space<vmem>>, %arg3: memref<1x1xf32, #tpu.memory_space<smem>>, %arg4: memref<8x8xf32, #tpu.memory_space<vmem>>, %arg5: memref<8x8xf32, #tpu.memory_space<vmem>>) attributes {dimension_semantics = [#tpu.dimension_semantics<arbitrary>], iteration_bounds = array<i64: 1>, scalar_prefetch = 0 : i64, scratch_operands = 2 : i64, tpu.core_type = #tpu.core_type<tc>, window_params = [{transform_indices = @transform_0, window_bounds = array<i64: 8, 1024>}, {transform_indices = @transform_1, window_bounds = array<i64: 8, 2048>}, {transform_indices = @transform_2, window_bounds = array<i64: 1, 1>}]} {
    %c0 = arith.constant 0 : index
    %c0_0 = arith.constant 0 : index
    %0 = vector.load %arg1[%c0, %c0_0] : memref<8x1024xf32, #tpu.memory_space<vmem>>, vector<8x1024xf32>
    %c0_1 = arith.constant 0 : index
    %c0_2 = arith.constant 0 : index
    %1 = vector.load %arg2[%c0_1, %c0_2] : memref<8x2048xf32, #tpu.memory_space<vmem>>, vector<8x2048xf32>
    %cst = arith.constant dense<0.000000e+00> : vector<8x8xf32>
    %2 = tpu.matmul %0, %0, %cst {dimension_numbers = #tpu.dot_dimension_numbers<[1], [1], [0], [0], [0, 0, 1, 0], [], []>} : vector<8x1024xf32>, vector<8x1024xf32>, vector<8x8xf32> -> vector<8x8xf32>
    %cst_3 = arith.constant dense<0.000000e+00> : vector<8x8xf32>
    %3 = tpu.matmul %1, %1, %cst_3 {dimension_numbers = #tpu.dot_dimension_numbers<[1], [1], [0], [0], [0, 0, 1, 0], [], []>} : vector<8x2048xf32>, vector<8x2048xf32>, vector<8x8xf32> -> vector<8x8xf32>
    %c0_i32 = arith.constant 0 : i32
    %4 = arith.cmpi eq, %arg0, %c0_i32 : i32
    %5 = arith.extui %4 : i1 to i32
    %c0_i32_4 = arith.constant 0 : i32
    %6 = arith.cmpi ne, %5, %c0_i32_4 : i32
    scf.if %6 {
      %c0_9 = arith.constant 0 : index
      %c0_10 = arith.constant 0 : index
      %13 = vector.load %arg4[%c0_9, %c0_10] : memref<8x8xf32, #tpu.memory_space<vmem>>, vector<8x8xf32>
      tpu.vector_store %arg4[%c0_9, %c0_10], %2 {strides = array<i32>} : memref<8x8xf32, #tpu.memory_space<vmem>>, vector<8x8xf32>,
      %c0_11 = arith.constant 0 : index
      %c0_12 = arith.constant 0 : index
      %14 = vector.load %arg5[%c0_11, %c0_12] : memref<8x8xf32, #tpu.memory_space<vmem>>, vector<8x8xf32>
      tpu.vector_store %arg5[%c0_11, %c0_12], %3 {strides = array<i32>} : memref<8x8xf32, #tpu.memory_space<vmem>>, vector<8x8xf32>,
    } else {
    }
    %c0_i32_5 = arith.constant 0 : i32
    %7 = arith.cmpi sgt, %arg0, %c0_i32_5 : i32
    %8 = arith.extui %7 : i1 to i32
    %c0_i32_6 = arith.constant 0 : i32
    %9 = arith.cmpi ne, %8, %c0_i32_6 : i32
    scf.if %9 {
      %c0_9 = arith.constant 0 : index
      %c0_10 = arith.constant 0 : index
      %13 = vector.load %arg4[%c0_9, %c0_10] : memref<8x8xf32, #tpu.memory_space<vmem>>, vector<8x8xf32>
      %14 = arith.addf %13, %2 : vector<8x8xf32>
      %c0_11 = arith.constant 0 : index
      %c0_12 = arith.constant 0 : index
      %15 = vector.load %arg4[%c0_11, %c0_12] : memref<8x8xf32, #tpu.memory_space<vmem>>, vector<8x8xf32>
      tpu.vector_store %arg4[%c0_11, %c0_12], %14 {strides = array<i32>} : memref<8x8xf32, #tpu.memory_space<vmem>>, vector<8x8xf32>,
      %c0_13 = arith.constant 0 : index
      %c0_14 = arith.constant 0 : index
      %16 = vector.load %arg5[%c0_13, %c0_14] : memref<8x8xf32, #tpu.memory_space<vmem>>, vector<8x8xf32>
      %17 = arith.addf %16, %3 : vector<8x8xf32>
      %c0_15 = arith.constant 0 : index
      %c0_16 = arith.constant 0 : index
      %18 = vector.load %arg5[%c0_15, %c0_16] : memref<8x8xf32, #tpu.memory_space<vmem>>, vector<8x8xf32>
      tpu.vector_store %arg5[%c0_15, %c0_16], %17 {strides = array<i32>} : memref<8x8xf32, #tpu.memory_space<vmem>>, vector<8x8xf32>,
    } else {
    }
    %c0_i32_7 = arith.constant 0 : i32
    %10 = arith.cmpi eq, %arg0, %c0_i32_7 : i32
    %11 = arith.extui %10 : i1 to i32
    %c0_i32_8 = arith.constant 0 : i32
    %12 = arith.cmpi ne, %11, %c0_i32_8 : i32
    scf.if %12 {
      %c0_9 = arith.constant 0 : index
      %c0_10 = arith.constant 0 : index
      %13 = vector.load %arg4[%c0_9, %c0_10] : memref<8x8xf32, #tpu.memory_space<vmem>>, vector<8x8xf32>
      %c0_11 = arith.constant 0 : index
      %c0_12 = arith.constant 0 : index
      %14 = vector.load %arg5[%c0_11, %c0_12] : memref<8x8xf32, #tpu.memory_space<vmem>>, vector<8x8xf32>
      %15 = arith.mulf %13, %13 : vector<8x8xf32>
      %cst_13 = arith.constant dense<0.000000e+00> : vector<8xf32>
      %16 = vector.multi_reduction <add>, %15, %cst_13 [1] : vector<8x8xf32> to vector<8xf32>
      %17 = vector.shape_cast %16 : vector<8xf32> to vector<8x1xf32>
      %cst_14 = arith.constant 1.000000e-24 : f32
      %18 = vector.broadcast %cst_14 : f32 to vector<8x1xf32>
      %19 = arith.maximumf %17, %18 : vector<8x1xf32>
      %20 = math.rsqrt %19 : vector<8x1xf32>
      %21 = vector.broadcast %20 : vector<8x1xf32> to vector<8x8xf32>
      %22 = arith.mulf %13, %21 : vector<8x8xf32>
      %23 = arith.mulf %14, %14 : vector<8x8xf32>
      %cst_15 = arith.constant dense<0.000000e+00> : vector<8xf32>
      %24 = vector.multi_reduction <add>, %23, %cst_15 [1] : vector<8x8xf32> to vector<8xf32>
      %25 = vector.shape_cast %24 : vector<8xf32> to vector<8x1xf32>
      %cst_16 = arith.constant 1.000000e-24 : f32
      %26 = vector.broadcast %cst_16 : f32 to vector<8x1xf32>
      %27 = arith.maximumf %25, %26 : vector<8x1xf32>
      %28 = math.rsqrt %27 : vector<8x1xf32>
      %29 = vector.broadcast %28 : vector<8x1xf32> to vector<8x8xf32>
      %30 = arith.mulf %14, %29 : vector<8x8xf32>
      %31 = arith.subf %22, %30 : vector<8x8xf32>
      %32 = arith.mulf %31, %31 : vector<8x8xf32>
      %33 = vector.shape_cast %32 : vector<8x8xf32> to vector<1x8x8xf32>
      %cst_17 = arith.constant dense<0.000000e+00> : vector<1xf32>
      %34 = vector.multi_reduction <add>, %33, %cst_17 [1, 2] : vector<1x8x8xf32> to vector<1xf32>
      %35 = vector.shape_cast %34 : vector<1xf32> to vector<1x1x1xf32>
      %36 = vector.extract %35[0, 0, 0] : f32 from vector<1x1x1xf32>
      %cst_18 = arith.constant 4.000000e+00 : f32
      %37 = arith.divf %36, %cst_18 : f32
      %c0_19 = arith.constant 0 : index
      %c0_20 = arith.constant 0 : index
      %38 = memref.load %arg3[%c0_19, %c0_20] : memref<1x1xf32, #tpu.memory_space<smem>>
      memref.store %37, %arg3[%c0_19, %c0_20] : memref<1x1xf32, #tpu.memory_space<smem>>
    } else {
    }
    return
  }
  func.func @transform_0(%arg0: i32) -> (i32, i32) {
    %c0_i32 = arith.constant 0 : i32
    %c0_i32_0 = arith.constant 0 : i32
    return %c0_i32, %arg0 : i32, i32
  }
  func.func @transform_1(%arg0: i32) -> (i32, i32) {
    %c0_i32 = arith.constant 0 : i32
    %c0_i32_0 = arith.constant 0 : i32
    return %c0_i32, %arg0 : i32, i32
  }
  func.func @transform_2(%arg0: i32) -> (i32, i32) {
    %c0_i32 = arith.constant 0 : i32
    %c0_i32_0 = arith.constant 0 : i32
    %c0_i32_1 = arith.constant 0 : i32
    return %c0_i32, %c0_i32_0 : i32, i32
  }
}

</mosaic_0001>

<llo_original>
// kernel: tpu_custom_call.1
$region0: #{tpu_custom_call.1}
  #allocation0 [shape = 'u32[]', space=smem, size = 0x4, offset = 0x4, fixed_abs, tag = 'smem constant byte address 0x4 - core index']
  #allocation1 [shape = 'u32[144,128]{1,0:T(1,128)}', space=vmem, size = 0x12000, scoped, tag = 'internal scratch']
  #allocation2 [shape = 'f32[8,8]{1,0:T(8,128)}', space=vmem, size = 0x1000, scoped, tag = 'scratch operand']
  #allocation3 [shape = 'f32[8,8]{1,0:T(8,128)}', space=vmem, size = 0x1000, scoped, tag = 'scratch operand']
  %s0 = inlined_call_operand.hbm [shape: f32[8,1024], index: 0, kind: input, shape index: {}]
  %s1 = inlined_call_operand.hbm [shape: f32[8,2048], index: 1, kind: input, shape index: {}]
  %s2 = inlined_call_operand.hbm [shape: f32[1,1], index: 2, kind: output, shape index: {}]
  %s3 = sld [smem:[#allocation0]]
  $region38: #{tpu_custom_call.1} parent=0
    _
  %s5 = ssub.s32 1, %s3
  %s6 = scalar_select 0, %s5, %s3
  $region1: #{tpu_custom_call.1} parent=0
    #allocation4 [shape = 'u8[32768]{0}', space=vmem, size = 0x8000, scoped, tag = 'input window, operand 0, single buffered']
    #allocation5 [shape = 's32[1]{0}', space=sflag, size = 0x4, scoped, tag = 'scoped memory for tpu_custom_call.1']
    #allocation6 [shape = 's32[1]{0}', space=sflag, size = 0x4, scoped, tag = 'scoped memory for tpu_custom_call.1']
    #allocation7 [shape = 'u8[65536]{0}', space=vmem, size = 0x10000, scoped, tag = 'input window, operand 1, single buffered']
    #allocation8 [shape = 's32[1]{0}', space=sflag, size = 0x4, scoped, tag = 'scoped memory for tpu_custom_call.1']
    #allocation9 [shape = 'u8[512]{0}', space=smem, size = 0x200, scoped, tag = 'output window, operand 0, single buffered']
    %7 = vsyncpa [#allocation5], 0
    %8 = vsyncpa [#allocation8], 0
    %9 = vsyncpa [#allocation6], 0
    // Predicated region
    $region2: #{tpu_custom_call.1} parent=1 // pred_check
      _
    $region3: #{tpu_custom_call.1} parent=1 // pred_check_branch
      %11 = sbr.rel (0) target = $region5
    $region4: #{tpu_custom_call.1} parent=1 // pred_region
      %s13 = ssub.s32 1024, 1024
      %14 = vsyncadd [#allocation5], %s13
      %s16 = sshll.u32 [#allocation4], 4
      %s17 = int_to_ptr.vmem [resolvable:$true] %s16
      %19 = dma.hbm_to_vmem [thread:$0]  %s0, 1024, %s17, [#allocation5]
    $region5: #{tpu_custom_call.1} parent=1 // pred_fallthru
      _
    // Predicated region
    $region6: #{tpu_custom_call.1} parent=1 // pred_check
      _
    $region7: #{tpu_custom_call.1} parent=1 // pred_check_branch
      %21 = sbr.rel (0) target = $region9
    $region8: #{tpu_custom_call.1} parent=1 // pred_region
      %s23 = ssub.s32 2048, 2048
      %24 = vsyncadd [#allocation8], %s23
      %s26 = sshll.u32 [#allocation7], 4
      %s27 = int_to_ptr.vmem [resolvable:$true] %s26
      %29 = dma.hbm_to_vmem [thread:$0]  %s1, 2048, %s27, [#allocation8]
    $region9: #{tpu_custom_call.1} parent=1 // pred_fallthru
      _
    // Predicated region
    $region10: #{tpu_custom_call.1} parent=1 // pred_check
      _
    $region11: #{tpu_custom_call.1} parent=1 // pred_check_branch
      %31 = sbr.rel (0) target = $region13
    $region12: #{tpu_custom_call.1} parent=1 // pred_region
      %32 = dma.done [#allocation5], 1024
    $region13: #{tpu_custom_call.1} parent=1 // pred_fallthru
      _
    // Predicated region
    $region14: #{tpu_custom_call.1} parent=1 // pred_check
      _
    $region15: #{tpu_custom_call.1} parent=1 // pred_check_branch
      %34 = sbr.rel (0) target = $region17
    $region16: #{tpu_custom_call.1} parent=1 // pred_region
      %35 = dma.done [#allocation8], 2048
    $region17: #{tpu_custom_call.1} parent=1 // pred_fallthru
      _
    %v36 = vld [vmem:[#allocation4] sm:$0xff]
    %v37 = vld [vmem:[#allocation4 + $0x8] sm:$0xff]
    %v38 = vld [vmem:[#allocation4 + $0x10] sm:$0xff]
    %v39 = vld [vmem:[#allocation4 + $0x18] sm:$0xff]
    %v40 = vld [vmem:[#allocation4 + $0x20] sm:$0xff]
    %v41 = vld [vmem:[#allocation4 + $0x28] sm:$0xff]
    %v42 = vld [vmem:[#allocation4 + $0x30] sm:$0xff]
    %v43 = vld [vmem:[#allocation4 + $0x38] sm:$0xff]
    %v44 = vld [vmem:[#allocation7] sm:$0xff]
    %v45 = vld [vmem:[#allocation7 + $0x8] sm:$0xff]
    %v46 = vld [vmem:[#allocation7 + $0x10] sm:$0xff]
    %v47 = vld [vmem:[#allocation7 + $0x18] sm:$0xff]
    %v48 = vld [vmem:[#allocation7 + $0x20] sm:$0xff]
    %v49 = vld [vmem:[#allocation7 + $0x28] sm:$0xff]
    %v50 = vld [vmem:[#allocation7 + $0x30] sm:$0xff]
    %v51 = vld [vmem:[#allocation7 + $0x38] sm:$0xff]
    %v52 = vld [vmem:[#allocation7 + $0x40] sm:$0xff]
    %v53 = vld [vmem:[#allocation7 + $0x48] sm:$0xff]
    %v54 = vld [vmem:[#allocation7 + $0x50] sm:$0xff]
    %v55 = vld [vmem:[#allocation7 + $0x58] sm:$0xff]
    %v56 = vld [vmem:[#allocation7 + $0x60] sm:$0xff]
    %v57 = vld [vmem:[#allocation7 + $0x68] sm:$0xff]
    %v58 = vld [vmem:[#allocation7 + $0x70] sm:$0xff]
    %v59 = vld [vmem:[#allocation7 + $0x78] sm:$0xff]
    %60 = vmatprep.subr.mxu0 0.0
    %61 = vmatpush1.xpose.msra.mxu0 0.0
    %62 = vmatprep.subr.mxu0 0.0
    %63 = vmatpush1.xpose.msra.mxu0 0.0
    %64 = vmatprep.subr.mxu0 0.0
    %65 = vmatpush1.xpose.msra.mxu0 0.0
    %66 = vmatprep.subr.mxu0 0.0
    %67 = vmatpush1.xpose.msra.mxu0 0.0
    %68 = vmatprep.subr.mxu0 0.0
    %69 = vmatpush1.xpose.msra.mxu0 0.0
    %70 = vmatprep.subr.mxu0 0.0
    %71 = vmatpush1.xpose.msra.mxu0 0.0
    %72 = vmatprep.subr.mxu0 0.0
    %73 = vmatpush1.xpose.msra.mxu0 0.0
    %74 = vmatprep.subr.mxu0 0.0
    %75 = vmatpush1.xpose.msra.mxu0 0.0
    %76 = vmatprep.subr.mxu0 0.0
    %77 = vmatpush1.xpose.msra.mxu0 0.0
    %78 = vmatprep.subr.mxu0 0.0
    %79 = vmatpush1.xpose.msra.mxu0 0.0
    %80 = vmatprep.subr.mxu0 0.0
    %81 = vmatpush1.xpose.msra.mxu0 0.0
    %82 = vmatprep.subr.mxu0 0.0
    %83 = vmatpush1.xpose.msra.mxu0 0.0
    %84 = vmatprep.subr.mxu0 0.0
    %85 = vmatpush1.xpose.msra.mxu0 0.0
    %86 = vmatprep.subr.mxu0 0.0
    %87 = vmatpush1.xpose.msra.mxu0 0.0
    %88 = vmatprep.subr.mxu0 0.0
    %89 = vmatpush1.xpose.msra.mxu0 0.0
    %90 = vmatprep.subr.mxu0 %v37
    %91 = vmatpush1.xpose.msra.mxu0 %v36
    %92 = vmatprep.subr.mxu0 0.0
    %93 = vmatpush2.xpose.msra.mxu0 0.0
    %94 = vmatprep.subr.mxu0 0.0
    %95 = vmatpush2.xpose.msra.mxu0 0.0
    %96 = vmatprep.subr.mxu0 0.0
    %97 = vmatpush2.xpose.msra.mxu0 0.0
    %98 = vmatprep.subr.mxu0 0.0
    %99 = vmatpush2.xpose.msra.mxu0 0.0
    %100 = vmatprep.subr.mxu0 0.0
    %101 = vmatpush2.xpose.msra.mxu0 0.0
    %102 = vmatprep.subr.mxu0 0.0
    %103 = vmatpush2.xpose.msra.mxu0 0.0
    %104 = vmatprep.subr.mxu0 0.0
    %105 = vmatpush2.xpose.msra.mxu0 0.0
    %106 = vmatprep.subr.mxu0 0.0
    %107 = vmatpush2.xpose.msra.mxu0 0.0
    %108 = vmatprep.subr.mxu0 0.0
    %109 = vmatpush2.xpose.msra.mxu0 0.0
    %110 = vmatprep.subr.mxu0 0.0
    %111 = vmatpush2.xpose.msra.mxu0 0.0
    %112 = vmatprep.subr.mxu0 0.0
    %113 = vmatpush2.xpose.msra.mxu0 0.0
    %114 = vmatprep.subr.mxu0 0.0
    %115 = vmatpush2.xpose.msra.mxu0 0.0
    %116 = vmatprep.subr.mxu0 0.0
    %117 = vmatpush2.xpose.msra.mxu0 0.0
    %118 = vmatprep.subr.mxu0 0.0
    %119 = vmatpush2.xpose.msra.mxu0 0.0
    %120 = vmatprep.subr.mxu0 0.0
    %121 = vmatpush2.xpose.msra.mxu0 0.0
    %122 = vmatprep.subr.mxu0 0.0
    %123 = vmatpush2.xpose.msra.mxu0 0.0
    %124 = vmatprep.mubr.f32.mxu0 %v37
    %125 = vmatmul.mubr.f32.gmra.mxu0 %v36
    %v126 = vpop.f32.mrf.mxu0
    %v127 = vadd.f32 0.0, %v126
    %v128 = vpop.f32.mrf.mxu0
    %129 = vdwg.mxu0
    %130 = vmatprep.subr.mxu0 0.0
    %131 = vmatpush1.xpose.msra.mxu0 0.0
    %132 = vmatprep.subr.mxu0 0.0
    %133 = vmatpush1.xpose.msra.mxu0 0.0
    %134 = vmatprep.subr.mxu0 0.0
    %135 = vmatpush1.xpose.msra.mxu0 0.0
    %136 = vmatprep.subr.mxu0 0.0
    %137 = vmatpush1.xpose.msra.mxu0 0.0
    %138 = vmatprep.subr.mxu0 0.0
    %139 = vmatpush1.xpose.msra.mxu0 0.0
    %140 = vmatprep.subr.mxu0 0.0
    %141 = vmatpush1.xpose.msra.mxu0 0.0
    %142 = vmatprep.subr.mxu0 0.0
    %143 = vmatpush1.xpose.msra.mxu0 0.0
    %144 = vmatprep.subr.mxu0 0.0
    %145 = vmatpush1.xpose.msra.mxu0 0.0
    %146 = vmatprep.subr.mxu0 0.0
    %147 = vmatpush1.xpose.msra.mxu0 0.0
    %148 = vmatprep.subr.mxu0 0.0
    %149 = vmatpush1.xpose.msra.mxu0 0.0
    %150 = vmatprep.subr.mxu0 0.0
    %151 = vmatpush1.xpose.msra.mxu0 0.0
    %152 = vmatprep.subr.mxu0 0.0
    %153 = vmatpush1.xpose.msra.mxu0 0.0
    %154 = vmatprep.subr.mxu0 0.0
    %155 = vmatpush1.xpose.msra.mxu0 0.0
    %156 = vmatprep.subr.mxu0 0.0
    %157 = vmatpush1.xpose.msra.mxu0 0.0
    %158 = vmatprep.subr.mxu0 0.0
    %159 = vmatpush1.xpose.msra.mxu0 0.0
    %160 = vmatprep.subr.mxu0 %v39
    %161 = vmatpush1.xpose.msra.mxu0 %v38
    %162 = vmatprep.subr.mxu0 0.0
    %163 = vmatpush2.xpose.msra.mxu0 0.0
    %164 = vmatprep.subr.mxu0 0.0
    %165 = vmatpush2.xpose.msra.mxu0 0.0
    %166 = vmatprep.subr.mxu0 0.0
    %167 = vmatpush2.xpose.msra.mxu0 0.0
    %168 = vmatprep.subr.mxu0 0.0
    %169 = vmatpush2.xpose.msra.mxu0 0.0
    %170 = vmatprep.subr.mxu0 0.0
    %171 = vmatpush2.xpose.msra.mxu0 0.0
    %172 = vmatprep.subr.mxu0 0.0
    %173 = vmatpush2.xpose.msra.mxu0 0.0
    %174 = vmatprep.subr.mxu0 0.0
    %175 = vmatpush2.xpose.msra.mxu0 0.0
    %176 = vmatprep.subr.mxu0 0.0
    %177 = vmatpush2.xpose.msra.mxu0 0.0
    %178 = vmatprep.subr.mxu0 0.0
    %179 = vmatpush2.xpose.msra.mxu0 0.0
    %180 = vmatprep.subr.mxu0 0.0
    %181 = vmatpush2.xpose.msra.mxu0 0.0
    %182 = vmatprep.subr.mxu0 0.0
    %183 = vmatpush2.xpose.msra.mxu0 0.0
    %184 = vmatprep.subr.mxu0 0.0
    %185 = vmatpush2.xpose.msra.mxu0 0.0
    %186 = vmatprep.subr.mxu0 0.0
    %187 = vmatpush2.xpose.msra.mxu0 0.0
    %188 = vmatprep.subr.mxu0 0.0
    %189 = vmatpush2.xpose.msra.mxu0 0.0
    %190 = vmatprep.subr.mxu0 0.0
    %191 = vmatpush2.xpose.msra.mxu0 0.0
    %192 = vmatprep.subr.mxu0 0.0
    %193 = vmatpush2.xpose.msra.mxu0 0.0
    %194 = vmatprep.mubr.f32.mxu0 %v39
    %195 = vmatmul.mubr.f32.gmra.mxu0 %v38
    %v196 = vpop.f32.mrf.mxu0
    %v197 = vadd.f32 %v127, %v196
    %v198 = vpop.f32.mrf.mxu0
    %199 = vdwg.mxu0
    %200 = vmatprep.subr.mxu0 0.0
    %201 = vmatpush1.xpose.msra.mxu0 0.0
    %202 = vmatprep.subr.mxu0 0.0
    %203 = vmatpush1.xpose.msra.mxu0 0.0
    %204 = vmatprep.subr.mxu0 0.0
    %205 = vmatpush1.xpose.msra.mxu0 0.0
    %206 = vmatprep.subr.mxu0 0.0
    %207 = vmatpush1.xpose.msra.mxu0 0.0
    %208 = vmatprep.subr.mxu0 0.0
    %209 = vmatpush1.xpose.msra.mxu0 0.0
    %210 = vmatprep.subr.mxu0 0.0
    %211 = vmatpush1.xpose.msra.mxu0 0.0
    %212 = vmatprep.subr.mxu0 0.0
    %213 = vmatpush1.xpose.msra.mxu0 0.0
    %214 = vmatprep.subr.mxu0 0.0
    %215 = vmatpush1.xpose.msra.mxu0 0.0
    %216 = vmatprep.subr.mxu0 0.0
    %217 = vmatpush1.xpose.msra.mxu0 0.0
    %218 = vmatprep.subr.mxu0 0.0
    %219 = vmatpush1.xpose.msra.mxu0 0.0
    %220 = vmatprep.subr.mxu0 0.0
    %221 = vmatpush1.xpose.msra.mxu0 0.0
    %222 = vmatprep.subr.mxu0 0.0
    %223 = vmatpush1.xpose.msra.mxu0 0.0
    %224 = vmatprep.subr.mxu0 0.0
    %225 = vmatpush1.xpose.msra.mxu0 0.0
    %226 = vmatprep.subr.mxu0 0.0
    %227 = vmatpush1.xpose.msra.mxu0 0.0
    %228 = vmatprep.subr.mxu0 0.0
    %229 = vmatpush1.xpose.msra.mxu0 0.0
    %230 = vmatprep.subr.mxu0 %v41
    %231 = vmatpush1.xpose.msra.mxu0 %v40
    %232 = vmatprep.subr.mxu0 0.0
    %233 = vmatpush2.xpose.msra.mxu0 0.0
    %234 = vmatprep.subr.mxu0 0.0
    %235 = vmatpush2.xpose.msra.mxu0 0.0
    %236 = vmatprep.subr.mxu0 0.0
    %237 = vmatpush2.xpose.msra.mxu0 0.0
    %238 = vmatprep.subr.mxu0 0.0
    %239 = vmatpush2.xpose.msra.mxu0 0.0
    %240 = vmatprep.subr.mxu0 0.0
    %241 = vmatpush2.xpose.msra.mxu0 0.0
    %242 = vmatprep.subr.mxu0 0.0
    %243 = vmatpush2.xpose.msra.mxu0 0.0
    %244 = vmatprep.subr.mxu0 0.0
    %245 = vmatpush2.xpose.msra.mxu0 0.0
    %246 = vmatprep.subr.mxu0 0.0
    %247 = vmatpush2.xpose.msra.mxu0 0.0
    %248 = vmatprep.subr.mxu0 0.0
    %249 = vmatpush2.xpose.msra.mxu0 0.0
    %250 = vmatprep.subr.mxu0 0.0
    %251 = vmatpush2.xpose.msra.mxu0 0.0
    %252 = vmatprep.subr.mxu0 0.0
    %253 = vmatpush2.xpose.msra.mxu0 0.0
    %254 = vmatprep.subr.mxu0 0.0
    %255 = vmatpush2.xpose.msra.mxu0 0.0
    %256 = vmatprep.subr.mxu0 0.0
    %257 = vmatpush2.xpose.msra.mxu0 0.0
    %258 = vmatprep.subr.mxu0 0.0
    %259 = vmatpush2.xpose.msra.mxu0 0.0
    %260 = vmatprep.subr.mxu0 0.0
    %261 = vmatpush2.xpose.msra.mxu0 0.0
    %262 = vmatprep.subr.mxu0 0.0
    %263 = vmatpush2.xpose.msra.mxu0 0.0
    %264 = vmatprep.mubr.f32.mxu0 %v41
    %265 = vmatmul.mubr.f32.gmra.mxu0 %v40
    %v266 = vpop.f32.mrf.mxu0
    %v267 = vadd.f32 %v197, %v266
    %v268 = vpop.f32.mrf.mxu0
    %269 = vdwg.mxu0
    %270 = vmatprep.subr.mxu0 0.0
    %271 = vmatpush1.xpose.msra.mxu0 0.0
    %272 = vmatprep.subr.mxu0 0.0
    %273 = vmatpush1.xpose.msra.mxu0 0.0
    %274 = vmatprep.subr.mxu0 0.0
    %275 = vmatpush1.xpose.msra.mxu0 0.0
    %276 = vmatprep.subr.mxu0 0.0
    %277 = vmatpush1.xpose.msra.mxu0 0.0
    %278 = vmatprep.subr.mxu0 0.0
    %279 = vmatpush1.xpose.msra.mxu0 0.0
    %280 = vmatprep.subr.mxu0 0.0
    %281 = vmatpush1.xpose.msra.mxu0 0.0
    %282 = vmatprep.subr.mxu0 0.0
    %283 = vmatpush1.xpose.msra.mxu0 0.0
    %284 = vmatprep.subr.mxu0 0.0
    %285 = vmatpush1.xpose.msra.mxu0 0.0
    %286 = vmatprep.subr.mxu0 0.0
    %287 = vmatpush1.xpose.msra.mxu0 0.0
    %288 = vmatprep.subr.mxu0 0.0
    %289 = vmatpush1.xpose.msra.mxu0 0.0
    %290 = vmatprep.subr.mxu0 0.0
    %291 = vmatpush1.xpose.msra.mxu0 0.0
    %292 = vmatprep.subr.mxu0 0.0
    %293 = vmatpush1.xpose.msra.mxu0 0.0
    %294 = vmatprep.subr.mxu0 0.0
    %295 = vmatpush1.xpose.msra.mxu0 0.0
    %296 = vmatprep.subr.mxu0 0.0
    %297 = vmatpush1.xpose.msra.mxu0 0.0
    %298 = vmatprep.subr.mxu0 0.0
    %299 = vmatpush1.xpose.msra.mxu0 0.0
    %300 = vmatprep.subr.mxu0 %v43
    %301 = vmatpush1.xpose.msra.mxu0 %v42
    %302 = vmatprep.subr.mxu0 0.0
    %303 = vmatpush2.xpose.msra.mxu0 0.0
    %304 = vmatprep.subr.mxu0 0.0
    %305 = vmatpush2.xpose.msra.mxu0 0.0
    %306 = vmatprep.subr.mxu0 0.0
    %307 = vmatpush2.xpose.msra.mxu0 0.0
    %308 = vmatprep.subr.mxu0 0.0
    %309 = vmatpush2.xpose.msra.mxu0 0.0
    %310 = vmatprep.subr.mxu0 0.0
    %311 = vmatpush2.xpose.msra.mxu0 0.0
    %312 = vmatprep.subr.mxu0 0.0
    %313 = vmatpush2.xpose.msra.mxu0 0.0
    %314 = vmatprep.subr.mxu0 0.0
    %315 = vmatpush2.xpose.msra.mxu0 0.0
    %316 = vmatprep.subr.mxu0 0.0
    %317 = vmatpush2.xpose.msra.mxu0 0.0
    %318 = vmatprep.subr.mxu0 0.0
    %319 = vmatpush2.xpose.msra.mxu0 0.0
    %320 = vmatprep.subr.mxu0 0.0
    %321 = vmatpush2.xpose.msra.mxu0 0.0
    %322 = vmatprep.subr.mxu0 0.0
    %323 = vmatpush2.xpose.msra.mxu0 0.0
    %324 = vmatprep.subr.mxu0 0.0
    %325 = vmatpush2.xpose.msra.mxu0 0.0
    %326 = vmatprep.subr.mxu0 0.0
    %327 = vmatpush2.xpose.msra.mxu0 0.0
    %328 = vmatprep.subr.mxu0 0.0
    %329 = vmatpush2.xpose.msra.mxu0 0.0
    %330 = vmatprep.subr.mxu0 0.0
    %331 = vmatpush2.xpose.msra.mxu0 0.0
    %332 = vmatprep.subr.mxu0 0.0
    %333 = vmatpush2.xpose.msra.mxu0 0.0
    %334 = vmatprep.mubr.f32.mxu0 %v43
    %335 = vmatmul.mubr.f32.gmra.mxu0 %v42
    %v336 = vpop.f32.mrf.mxu0
    %v337 = vadd.f32 %v267, %v336
    %v338 = vpop.f32.mrf.mxu0
    %339 = vdwg.mxu0
    %340 = vmatprep.subr.mxu0 0.0
    %341 = vmatpush1.xpose.msra.mxu0 0.0
    %342 = vmatprep.subr.mxu0 0.0
    %343 = vmatpush1.xpose.msra.mxu0 0.0
    %344 = vmatprep.subr.mxu0 0.0
    %345 = vmatpush1.xpose.msra.mxu0 0.0
    %346 = vmatprep.subr.mxu0 0.0
    %347 = vmatpush1.xpose.msra.mxu0 0.0
    %348 = vmatprep.subr.mxu0 0.0
    %349 = vmatpush1.xpose.msra.mxu0 0.0
    %350 = vmatprep.subr.mxu0 0.0
    %351 = vmatpush1.xpose.msra.mxu0 0.0
    %352 = vmatprep.subr.mxu0 0.0
    %353 = vmatpush1.xpose.msra.mxu0 0.0
    %354 = vmatprep.subr.mxu0 0.0
    %355 = vmatpush1.xpose.msra.mxu0 0.0
    %356 = vmatprep.subr.mxu0 0.0
    %357 = vmatpush1.xpose.msra.mxu0 0.0
    %358 = vmatprep.subr.mxu0 0.0
    %359 = vmatpush1.xpose.msra.mxu0 0.0
    %360 = vmatprep.subr.mxu0 0.0
    %361 = vmatpush1.xpose.msra.mxu0 0.0
    %362 = vmatprep.subr.mxu0 0.0
    %363 = vmatpush1.xpose.msra.mxu0 0.0
    %364 = vmatprep.subr.mxu0 0.0
    %365 = vmatpush1.xpose.msra.mxu0 0.0
    %366 = vmatprep.subr.mxu0 0.0
    %367 = vmatpush1.xpose.msra.mxu0 0.0
    %368 = vmatprep.subr.mxu0 0.0
    %369 = vmatpush1.xpose.msra.mxu0 0.0
    %370 = vmatprep.subr.mxu0 %v45
    %371 = vmatpush1.xpose.msra.mxu0 %v44
    %372 = vmatprep.subr.mxu0 0.0
    %373 = vmatpush2.xpose.msra.mxu0 0.0
    %374 = vmatprep.subr.mxu0 0.0
    %375 = vmatpush2.xpose.msra.mxu0 0.0
    %376 = vmatprep.subr.mxu0 0.0
    %377 = vmatpush2.xpose.msra.mxu0 0.0
    %378 = vmatprep.subr.mxu0 0.0
    %379 = vmatpush2.xpose.msra.mxu0 0.0
    %380 = vmatprep.subr.mxu0 0.0
    %381 = vmatpush2.xpose.msra.mxu0 0.0
    %382 = vmatprep.subr.mxu0 0.0
    %383 = vmatpush2.xpose.msra.mxu0 0.0
    %384 = vmatprep.subr.mxu0 0.0
    %385 = vmatpush2.xpose.msra.mxu0 0.0
    %386 = vmatprep.subr.mxu0 0.0
    %387 = vmatpush2.xpose.msra.mxu0 0.0
    %388 = vmatprep.subr.mxu0 0.0
    %389 = vmatpush2.xpose.msra.mxu0 0.0
    %390 = vmatprep.subr.mxu0 0.0
    %391 = vmatpush2.xpose.msra.mxu0 0.0
    %392 = vmatprep.subr.mxu0 0.0
    %393 = vmatpush2.xpose.msra.mxu0 0.0
    %394 = vmatprep.subr.mxu0 0.0
    %395 = vmatpush2.xpose.msra.mxu0 0.0
    %396 = vmatprep.subr.mxu0 0.0
    %397 = vmatpush2.xpose.msra.mxu0 0.0
    %398 = vmatprep.subr.mxu0 0.0
    %399 = vmatpush2.xpose.msra.mxu0 0.0
    %400 = vmatprep.subr.mxu0 0.0
    %401 = vmatpush2.xpose.msra.mxu0 0.0
    %402 = vmatprep.subr.mxu0 0.0
    %403 = vmatpush2.xpose.msra.mxu0 0.0
    %404 = vmatprep.mubr.f32.mxu0 %v45
    %405 = vmatmul.mubr.f32.gmra.mxu0 %v44
    %v406 = vpop.f32.mrf.mxu0
    %v407 = vadd.f32 0.0, %v406
    %v408 = vpop.f32.mrf.mxu0
    %409 = vdwg.mxu0
    %410 = vmatprep.subr.mxu0 0.0
    %411 = vmatpush1.xpose.msra.mxu0 0.0
    %412 = vmatprep.subr.mxu0 0.0
    %413 = vmatpush1.xpose.msra.mxu0 0.0
    %414 = vmatprep.subr.mxu0 0.0
    %415 = vmatpush1.xpose.msra.mxu0 0.0
    %416 = vmatprep.subr.mxu0 0.0
    %417 = vmatpush1.xpose.msra.mxu0 0.0
    %418 = vmatprep.subr.mxu0 0.0
    %419 = vmatpush1.xpose.msra.mxu0 0.0
    %420 = vmatprep.subr.mxu0 0.0
    %421 = vmatpush1.xpose.msra.mxu0 0.0
    %422 = vmatprep.subr.mxu0 0.0
    %423 = vmatpush1.xpose.msra.mxu0 0.0
    %424 = vmatprep.subr.mxu0 0.0
    %425 = vmatpush1.xpose.msra.mxu0 0.0
    %426 = vmatprep.subr.mxu0 0.0
    %427 = vmatpush1.xpose.msra.mxu0 0.0
    %428 = vmatprep.subr.mxu0 0.0
    %429 = vmatpush1.xpose.msra.mxu0 0.0
    %430 = vmatprep.subr.mxu0 0.0
    %431 = vmatpush1.xpose.msra.mxu0 0.0
    %432 = vmatprep.subr.mxu0 0.0
    %433 = vmatpush1.xpose.msra.mxu0 0.0
    %434 = vmatprep.subr.mxu0 0.0
    %435 = vmatpush1.xpose.msra.mxu0 0.0
    %436 = vmatprep.subr.mxu0 0.0
    %437 = vmatpush1.xpose.msra.mxu0 0.0
    %438 = vmatprep.subr.mxu0 0.0
    %439 = vmatpush1.xpose.msra.mxu0 0.0
    %440 = vmatprep.subr.mxu0 %v47
    %441 = vmatpush1.xpose.msra.mxu0 %v46
    %442 = vmatprep.subr.mxu0 0.0
    %443 = vmatpush2.xpose.msra.mxu0 0.0
    %444 = vmatprep.subr.mxu0 0.0
    %445 = vmatpush2.xpose.msra.mxu0 0.0
    %446 = vmatprep.subr.mxu0 0.0
    %447 = vmatpush2.xpose.msra.mxu0 0.0
    %448 = vmatprep.subr.mxu0 0.0
    %449 = vmatpush2.xpose.msra.mxu0 0.0
    %450 = vmatprep.subr.mxu0 0.0
    %451 = vmatpush2.xpose.msra.mxu0 0.0
    %452 = vmatprep.subr.mxu0 0.0
    %453 = vmatpush2.xpose.msra.mxu0 0.0
    %454 = vmatprep.subr.mxu0 0.0
    %455 = vmatpush2.xpose.msra.mxu0 0.0
    %456 = vmatprep.subr.mxu0 0.0
    %457 = vmatpush2.xpose.msra.mxu0 0.0
    %458 = vmatprep.subr.mxu0 0.0
    %459 = vmatpush2.xpose.msra.mxu0 0.0
    %460 = vmatprep.subr.mxu0 0.0
    %461 = vmatpush2.xpose.msra.mxu0 0.0
    %462 = vmatprep.subr.mxu0 0.0
    %463 = vmatpush2.xpose.msra.mxu0 0.0
    %464 = vmatprep.subr.mxu0 0.0
    %465 = vmatpush2.xpose.msra.mxu0 0.0
    %466 = vmatprep.subr.mxu0 0.0
    %467 = vmatpush2.xpose.msra.mxu0 0.0
    %468 = vmatprep.subr.mxu0 0.0
    %469 = vmatpush2.xpose.msra.mxu0 0.0
    %470 = vmatprep.subr.mxu0 0.0
    %471 = vmatpush2.xpose.msra.mxu0 0.0
    %472 = vmatprep.subr.mxu0 0.0
    %473 = vmatpush2.xpose.msra.mxu0 0.0
    %474 = vmatprep.mubr.f32.mxu0 %v47
    %475 = vmatmul.mubr.f32.gmra.mxu0 %v46
    %v476 = vpop.f32.mrf.mxu0
    %v477 = vadd.f32 %v407, %v476
    %v478 = vpop.f32.mrf.mxu0
    %479 = vdwg.mxu0
    %480 = vmatprep.subr.mxu0 0.0
    %481 = vmatpush1.xpose.msra.mxu0 0.0
    %482 = vmatprep.subr.mxu0 0.0
    %483 = vmatpush1.xpose.msra.mxu0 0.0
    %484 = vmatprep.subr.mxu0 0.0
    %485 = vmatpush1.xpose.msra.mxu0 0.0
    %486 = vmatprep.subr.mxu0 0.0
    %487 = vmatpush1.xpose.msra.mxu0 0.0
    %488 = vmatprep.subr.mxu0 0.0
    %489 = vmatpush1.xpose.msra.mxu0 0.0
    %490 = vmatprep.subr.mxu0 0.0
    %491 = vmatpush1.xpose.msra.mxu0 0.0
    %492 = vmatprep.subr.mxu0 0.0
    %493 = vmatpush1.xpose.msra.mxu0 0.0
    %494 = vmatprep.subr.mxu0 0.0
    %495 = vmatpush1.xpose.msra.mxu0 0.0
    %496 = vmatprep.subr.mxu0 0.0
    %497 = vmatpush1.xpose.msra.mxu0 0.0
    %498 = vmatprep.subr.mxu0 0.0
    %499 = vmatpush1.xpose.msra.mxu0 0.0
    %500 = vmatprep.subr.mxu0 0.0
    %501 = vmatpush1.xpose.msra.mxu0 0.0
    %502 = vmatprep.subr.mxu0 0.0
    %503 = vmatpush1.xpose.msra.mxu0 0.0
    %504 = vmatprep.subr.mxu0 0.0
    %505 = vmatpush1.xpose.msra.mxu0 0.0
    %506 = vmatprep.subr.mxu0 0.0
    %507 = vmatpush1.xpose.msra.mxu0 0.0
    %508 = vmatprep.subr.mxu0 0.0
    %509 = vmatpush1.xpose.msra.mxu0 0.0
    %510 = vmatprep.subr.mxu0 %v49
    %511 = vmatpush1.xpose.msra.mxu0 %v48
    %512 = vmatprep.subr.mxu0 0.0
    %513 = vmatpush2.xpose.msra.mxu0 0.0
    %514 = vmatprep.subr.mxu0 0.0
    %515 = vmatpush2.xpose.msra.mxu0 0.0
    %516 = vmatprep.subr.mxu0 0.0
    %517 = vmatpush2.xpose.msra.mxu0 0.0
    %518 = vmatprep.subr.mxu0 0.0
    %519 = vmatpush2.xpose.msra.mxu0 0.0
    %520 = vmatprep.subr.mxu0 0.0
    %521 = vmatpush2.xpose.msra.mxu0 0.0
    %522 = vmatprep.subr.mxu0 0.0
    %523 = vmatpush2.xpose.msra.mxu0 0.0
    %524 = vmatprep.subr.mxu0 0.0
    %525 = vmatpush2.xpose.msra.mxu0 0.0
    %526 = vmatprep.subr.mxu0 0.0
    %527 = vmatpush2.xpose.msra.mxu0 0.0
    %528 = vmatprep.subr.mxu0 0.0
    %529 = vmatpush2.xpose.msra.mxu0 0.0
    %530 = vmatprep.subr.mxu0 0.0
    %531 = vmatpush2.xpose.msra.mxu0 0.0
    %532 = vmatprep.subr.mxu0 0.0
    %533 = vmatpush2.xpose.msra.mxu0 0.0
    %534 = vmatprep.subr.mxu0 0.0
    %535 = vmatpush2.xpose.msra.mxu0 0.0
    %536 = vmatprep.subr.mxu0 0.0
    %537 = vmatpush2.xpose.msra.mxu0 0.0
    %538 = vmatprep.subr.mxu0 0.0
    %539 = vmatpush2.xpose.msra.mxu0 0.0
    %540 = vmatprep.subr.mxu0 0.0
    %541 = vmatpush2.xpose.msra.mxu0 0.0
    %542 = vmatprep.subr.mxu0 0.0
    %543 = vmatpush2.xpose.msra.mxu0 0.0
    %544 = vmatprep.mubr.f32.mxu0 %v49
    %545 = vmatmul.mubr.f32.gmra.mxu0 %v48
    %v546 = vpop.f32.mrf.mxu0
    %v547 = vadd.f32 %v477, %v546
    %v548 = vpop.f32.mrf.mxu0
    %549 = vdwg.mxu0
    %550 = vmatprep.subr.mxu0 0.0
    %551 = vmatpush1.xpose.msra.mxu0 0.0
    %552 = vmatprep.subr.mxu0 0.0
    %553 = vmatpush1.xpose.msra.mxu0 0.0
    %554 = vmatprep.subr.mxu0 0.0
    %555 = vmatpush1.xpose.msra.mxu0 0.0
    %556 = vmatprep.subr.mxu0 0.0
    %557 = vmatpush1.xpose.msra.mxu0 0.0
    %558 = vmatprep.subr.mxu0 0.0
    %559 = vmatpush1.xpose.msra.mxu0 0.0
    %560 = vmatprep.subr.mxu0 0.0
    %561 = vmatpush1.xpose.msra.mxu0 0.0
    %562 = vmatprep.subr.mxu0 0.0
    %563 = vmatpush1.xpose.msra.mxu0 0.0
    %564 = vmatprep.subr.mxu0 0.0
    %565 = vmatpush1.xpose.msra.mxu0 0.0
    %566 = vmatprep.subr.mxu0 0.0
    %567 = vmatpush1.xpose.msra.mxu0 0.0
    %568 = vmatprep.subr.mxu0 0.0
    %569 = vmatpush1.xpose.msra.mxu0 0.0
    %570 = vmatprep.subr.mxu0 0.0
    %571 = vmatpush1.xpose.msra.mxu0 0.0
    %572 = vmatprep.subr.mxu0 0.0
    %573 = vmatpush1.xpose.msra.mxu0 0.0
    %574 = vmatprep.subr.mxu0 0.0
    %575 = vmatpush1.xpose.msra.mxu0 0.0
    %576 = vmatprep.subr.mxu0 0.0
    %577 = vmatpush1.xpose.msra.mxu0 0.0
    %578 = vmatprep.subr.mxu0 0.0
    %579 = vmatpush1.xpose.msra.mxu0 0.0
    %580 = vmatprep.subr.mxu0 %v51
    %581 = vmatpush1.xpose.msra.mxu0 %v50
    %582 = vmatprep.subr.mxu0 0.0
    %583 = vmatpush2.xpose.msra.mxu0 0.0
    %584 = vmatprep.subr.mxu0 0.0
    %585 = vmatpush2.xpose.msra.mxu0 0.0
    %586 = vmatprep.subr.mxu0 0.0
    %587 = vmatpush2.xpose.msra.mxu0 0.0
    %588 = vmatprep.subr.mxu0 0.0
    %589 = vmatpush2.xpose.msra.mxu0 0.0
    %590 = vmatprep.subr.mxu0 0.0
    %591 = vmatpush2.xpose.msra.mxu0 0.0
    %592 = vmatprep.subr.mxu0 0.0
    %593 = vmatpush2.xpose.msra.mxu0 0.0
    %594 = vmatprep.subr.mxu0 0.0
    %595 = vmatpush2.xpose.msra.mxu0 0.0
    %596 = vmatprep.subr.mxu0 0.0
    %597 = vmatpush2.xpose.msra.mxu0 0.0
    %598 = vmatprep.subr.mxu0 0.0
    %599 = vmatpush2.xpose.msra.mxu0 0.0
    %600 = vmatprep.subr.mxu0 0.0
    %601 = vmatpush2.xpose.msra.mxu0 0.0
    %602 = vmatprep.subr.mxu0 0.0
    %603 = vmatpush2.xpose.msra.mxu0 0.0
    %604 = vmatprep.subr.mxu0 0.0
    %605 = vmatpush2.xpose.msra.mxu0 0.0
    %606 = vmatprep.subr.mxu0 0.0
    %607 = vmatpush2.xpose.msra.mxu0 0.0
    %608 = vmatprep.subr.mxu0 0.0
    %609 = vmatpush2.xpose.msra.mxu0 0.0
    %610 = vmatprep.subr.mxu0 0.0
    %611 = vmatpush2.xpose.msra.mxu0 0.0
    %612 = vmatprep.subr.mxu0 0.0
    %613 = vmatpush2.xpose.msra.mxu0 0.0
    %614 = vmatprep.mubr.f32.mxu0 %v51
    %615 = vmatmul.mubr.f32.gmra.mxu0 %v50
    %v616 = vpop.f32.mrf.mxu0
    %v617 = vadd.f32 %v547, %v616
    %v618 = vpop.f32.mrf.mxu0
    %619 = vdwg.mxu0
    %620 = vmatprep.subr.mxu0 0.0
    %621 = vmatpush1.xpose.msra.mxu0 0.0
    %622 = vmatprep.subr.mxu0 0.0
    %623 = vmatpush1.xpose.msra.mxu0 0.0
    %624 = vmatprep.subr.mxu0 0.0
    %625 = vmatpush1.xpose.msra.mxu0 0.0
    %626 = vmatprep.subr.mxu0 0.0
    %627 = vmatpush1.xpose.msra.mxu0 0.0
    %628 = vmatprep.subr.mxu0 0.0
    %629 = vmatpush1.xpose.msra.mxu0 0.0
    %630 = vmatprep.subr.mxu0 0.0
    %631 = vmatpush1.xpose.msra.mxu0 0.0
    %632 = vmatprep.subr.mxu0 0.0
    %633 = vmatpush1.xpose.msra.mxu0 0.0
    %634 = vmatprep.subr.mxu0 0.0
    %635 = vmatpush1.xpose.msra.mxu0 0.0
    %636 = vmatprep.subr.mxu0 0.0
    %637 = vmatpush1.xpose.msra.mxu0 0.0
    %638 = vmatprep.subr.mxu0 0.0
    %639 = vmatpush1.xpose.msra.mxu0 0.0
    %640 = vmatprep.subr.mxu0 0.0
    %641 = vmatpush1.xpose.msra.mxu0 0.0
    %642 = vmatprep.subr.mxu0 0.0
    %643 = vmatpush1.xpose.msra.mxu0 0.0
    %644 = vmatprep.subr.mxu0 0.0
    %645 = vmatpush1.xpose.msra.mxu0 0.0
    %646 = vmatprep.subr.mxu0 0.0
    %647 = vmatpush1.xpose.msra.mxu0 0.0
    %648 = vmatprep.subr.mxu0 0.0
    %649 = vmatpush1.xpose.msra.mxu0 0.0
    %650 = vmatprep.subr.mxu0 %v53
    %651 = vmatpush1.xpose.msra.mxu0 %v52
    %652 = vmatprep.subr.mxu0 0.0
    %653 = vmatpush2.xpose.msra.mxu0 0.0
    %654 = vmatprep.subr.mxu0 0.0
    %655 = vmatpush2.xpose.msra.mxu0 0.0
    %656 = vmatprep.subr.mxu0 0.0
    %657 = vmatpush2.xpose.msra.mxu0 0.0
    %658 = vmatprep.subr.mxu0 0.0
    %659 = vmatpush2.xpose.msra.mxu0 0.0
    %660 = vmatprep.subr.mxu0 0.0
    %661 = vmatpush2.xpose.msra.mxu0 0.0
    %662 = vmatprep.subr.mxu0 0.0
    %663 = vmatpush2.xpose.msra.mxu0 0.0
    %664 = vmatprep.subr.mxu0 0.0
    %665 = vmatpush2.xpose.msra.mxu0 0.0
    %666 = vmatprep.subr.mxu0 0.0
    %667 = vmatpush2.xpose.msra.mxu0 0.0
    %668 = vmatprep.subr.mxu0 0.0
    %669 = vmatpush2.xpose.msra.mxu0 0.0
    %670 = vmatprep.subr.mxu0 0.0
    %671 = vmatpush2.xpose.msra.mxu0 0.0
    %672 = vmatprep.subr.mxu0 0.0
    %673 = vmatpush2.xpose.msra.mxu0 0.0
    %674 = vmatprep.subr.mxu0 0.0
    %675 = vmatpush2.xpose.msra.mxu0 0.0
    %676 = vmatprep.subr.mxu0 0.0
    %677 = vmatpush2.xpose.msra.mxu0 0.0
    %678 = vmatprep.subr.mxu0 0.0
    %679 = vmatpush2.xpose.msra.mxu0 0.0
    %680 = vmatprep.subr.mxu0 0.0
    %681 = vmatpush2.xpose.msra.mxu0 0.0
    %682 = vmatprep.subr.mxu0 0.0
    %683 = vmatpush2.xpose.msra.mxu0 0.0
    %684 = vmatprep.mubr.f32.mxu0 %v53
    %685 = vmatmul.mubr.f32.gmra.mxu0 %v52
    %v686 = vpop.f32.mrf.mxu0
    %v687 = vadd.f32 %v617, %v686
    %v688 = vpop.f32.mrf.mxu0
    %689 = vdwg.mxu0
    %690 = vmatprep.subr.mxu0 0.0
    %691 = vmatpush1.xpose.msra.mxu0 0.0
    %692 = vmatprep.subr.mxu0 0.0
    %693 = vmatpush1.xpose.msra.mxu0 0.0
    %694 = vmatprep.subr.mxu0 0.0
    %695 = vmatpush1.xpose.msra.mxu0 0.0
    %696 = vmatprep.subr.mxu0 0.0
    %697 = vmatpush1.xpose.msra.mxu0 0.0
    %698 = vmatprep.subr.mxu0 0.0
    %699 = vmatpush1.xpose.msra.mxu0 0.0
    %700 = vmatprep.subr.mxu0 0.0
    %701 = vmatpush1.xpose.msra.mxu0 0.0
    %702 = vmatprep.subr.mxu0 0.0
    %703 = vmatpush1.xpose.msra.mxu0 0.0
    %704 = vmatprep.subr.mxu0 0.0
    %705 = vmatpush1.xpose.msra.mxu0 0.0
    %706 = vmatprep.subr.mxu0 0.0
    %707 = vmatpush1.xpose.msra.mxu0 0.0
    %708 = vmatprep.subr.mxu0 0.0
    %709 = vmatpush1.xpose.msra.mxu0 0.0
    %710 = vmatprep.subr.mxu0 0.0
    %711 = vmatpush1.xpose.msra.mxu0 0.0
    %712 = vmatprep.subr.mxu0 0.0
    %713 = vmatpush1.xpose.msra.mxu0 0.0
    %714 = vmatprep.subr.mxu0 0.0
    %715 = vmatpush1.xpose.msra.mxu0 0.0
    %716 = vmatprep.subr.mxu0 0.0
    %717 = vmatpush1.xpose.msra.mxu0 0.0
    %718 = vmatprep.subr.mxu0 0.0
    %719 = vmatpush1.xpose.msra.mxu0 0.0
    %720 = vmatprep.subr.mxu0 %v55
    %721 = vmatpush1.xpose.msra.mxu0 %v54
    %722 = vmatprep.subr.mxu0 0.0
    %723 = vmatpush2.xpose.msra.mxu0 0.0
    %724 = vmatprep.subr.mxu0 0.0
    %725 = vmatpush2.xpose.msra.mxu0 0.0
    %726 = vmatprep.subr.mxu0 0.0
    %727 = vmatpush2.xpose.msra.mxu0 0.0
    %728 = vmatprep.subr.mxu0 0.0
    %729 = vmatpush2.xpose.msra.mxu0 0.0
    %730 = vmatprep.subr.mxu0 0.0
    %731 = vmatpush2.xpose.msra.mxu0 0.0
    %732 = vmatprep.subr.mxu0 0.0
    %733 = vmatpush2.xpose.msra.mxu0 0.0
    %734 = vmatprep.subr.mxu0 0.0
    %735 = vmatpush2.xpose.msra.mxu0 0.0
    %736 = vmatprep.subr.mxu0 0.0
    %737 = vmatpush2.xpose.msra.mxu0 0.0
    %738 = vmatprep.subr.mxu0 0.0
    %739 = vmatpush2.xpose.msra.mxu0 0.0
    %740 = vmatprep.subr.mxu0 0.0
    %741 = vmatpush2.xpose.msra.mxu0 0.0
    %742 = vmatprep.subr.mxu0 0.0
    %743 = vmatpush2.xpose.msra.mxu0 0.0
    %744 = vmatprep.subr.mxu0 0.0
    %745 = vmatpush2.xpose.msra.mxu0 0.0
    %746 = vmatprep.subr.mxu0 0.0
    %747 = vmatpush2.xpose.msra.mxu0 0.0
    %748 = vmatprep.subr.mxu0 0.0
    %749 = vmatpush2.xpose.msra.mxu0 0.0
    %750 = vmatprep.subr.mxu0 0.0
    %751 = vmatpush2.xpose.msra.mxu0 0.0
    %752 = vmatprep.subr.mxu0 0.0
    %753 = vmatpush2.xpose.msra.mxu0 0.0
    %754 = vmatprep.mubr.f32.mxu0 %v55
    %755 = vmatmul.mubr.f32.gmra.mxu0 %v54
    %v756 = vpop.f32.mrf.mxu0
    %v757 = vadd.f32 %v687, %v756
    %v758 = vpop.f32.mrf.mxu0
    %759 = vdwg.mxu0
    %760 = vmatprep.subr.mxu0 0.0
    %761 = vmatpush1.xpose.msra.mxu0 0.0
    %762 = vmatprep.subr.mxu0 0.0
    %763 = vmatpush1.xpose.msra.mxu0 0.0
    %764 = vmatprep.subr.mxu0 0.0
    %765 = vmatpush1.xpose.msra.mxu0 0.0
    %766 = vmatprep.subr.mxu0 0.0
    %767 = vmatpush1.xpose.msra.mxu0 0.0
    %768 = vmatprep.subr.mxu0 0.0
    %769 = vmatpush1.xpose.msra.mxu0 0.0
    %770 = vmatprep.subr.mxu0 0.0
    %771 = vmatpush1.xpose.msra.mxu0 0.0
    %772 = vmatprep.subr.mxu0 0.0
    %773 = vmatpush1.xpose.msra.mxu0 0.0
    %774 = vmatprep.subr.mxu0 0.0
    %775 = vmatpush1.xpose.msra.mxu0 0.0
    %776 = vmatprep.subr.mxu0 0.0
    %777 = vmatpush1.xpose.msra.mxu0 0.0
    %778 = vmatprep.subr.mxu0 0.0
    %779 = vmatpush1.xpose.msra.mxu0 0.0
    %780 = vmatprep.subr.mxu0 0.0
    %781 = vmatpush1.xpose.msra.mxu0 0.0
    %782 = vmatprep.subr.mxu0 0.0
    %783 = vmatpush1.xpose.msra.mxu0 0.0
    %784 = vmatprep.subr.mxu0 0.0
    %785 = vmatpush1.xpose.msra.mxu0 0.0
    %786 = vmatprep.subr.mxu0 0.0
    %787 = vmatpush1.xpose.msra.mxu0 0.0
    %788 = vmatprep.subr.mxu0 0.0
    %789 = vmatpush1.xpose.msra.mxu0 0.0
    %790 = vmatprep.subr.mxu0 %v57
    %791 = vmatpush1.xpose.msra.mxu0 %v56
    %792 = vmatprep.subr.mxu0 0.0
    %793 = vmatpush2.xpose.msra.mxu0 0.0
    %794 = vmatprep.subr.mxu0 0.0
    %795 = vmatpush2.xpose.msra.mxu0 0.0
    %796 = vmatprep.subr.mxu0 0.0
    %797 = vmatpush2.xpose.msra.mxu0 0.0
    %798 = vmatprep.subr.mxu0 0.0
    %799 = vmatpush2.xpose.msra.mxu0 0.0
    %800 = vmatprep.subr.mxu0 0.0
    %801 = vmatpush2.xpose.msra.mxu0 0.0
    %802 = vmatprep.subr.mxu0 0.0
    %803 = vmatpush2.xpose.msra.mxu0 0.0
    %804 = vmatprep.subr.mxu0 0.0
    %805 = vmatpush2.xpose.msra.mxu0 0.0
    %806 = vmatprep.subr.mxu0 0.0
    %807 = vmatpush2.xpose.msra.mxu0 0.0
    %808 = vmatprep.subr.mxu0 0.0
    %809 = vmatpush2.xpose.msra.mxu0 0.0
    %810 = vmatprep.subr.mxu0 0.0
    %811 = vmatpush2.xpose.msra.mxu0 0.0
    %812 = vmatprep.subr.mxu0 0.0
    %813 = vmatpush2.xpose.msra.mxu0 0.0
    %814 = vmatprep.subr.mxu0 0.0
    %815 = vmatpush2.xpose.msra.mxu0 0.0
    %816 = vmatprep.subr.mxu0 0.0
    %817 = vmatpush2.xpose.msra.mxu0 0.0
    %818 = vmatprep.subr.mxu0 0.0
    %819 = vmatpush2.xpose.msra.mxu0 0.0
    %820 = vmatprep.subr.mxu0 0.0
    %821 = vmatpush2.xpose.msra.mxu0 0.0
    %822 = vmatprep.subr.mxu0 0.0
    %823 = vmatpush2.xpose.msra.mxu0 0.0
    %824 = vmatprep.mubr.f32.mxu0 %v57
    %825 = vmatmul.mubr.f32.gmra.mxu0 %v56
    %v826 = vpop.f32.mrf.mxu0
    %v827 = vadd.f32 %v757, %v826
    %v828 = vpop.f32.mrf.mxu0
    %829 = vdwg.mxu0
    %830 = vmatprep.subr.mxu0 0.0
    %831 = vmatpush1.xpose.msra.mxu0 0.0
    %832 = vmatprep.subr.mxu0 0.0
    %833 = vmatpush1.xpose.msra.mxu0 0.0
    %834 = vmatprep.subr.mxu0 0.0
    %835 = vmatpush1.xpose.msra.mxu0 0.0
    %836 = vmatprep.subr.mxu0 0.0
    %837 = vmatpush1.xpose.msra.mxu0 0.0
    %838 = vmatprep.subr.mxu0 0.0
    %839 = vmatpush1.xpose.msra.mxu0 0.0
    %840 = vmatprep.subr.mxu0 0.0
    %841 = vmatpush1.xpose.msra.mxu0 0.0
    %842 = vmatprep.subr.mxu0 0.0
    %843 = vmatpush1.xpose.msra.mxu0 0.0
    %844 = vmatprep.subr.mxu0 0.0
    %845 = vmatpush1.xpose.msra.mxu0 0.0
    %846 = vmatprep.subr.mxu0 0.0
    %847 = vmatpush1.xpose.msra.mxu0 0.0
    %848 = vmatprep.subr.mxu0 0.0
    %849 = vmatpush1.xpose.msra.mxu0 0.0
    %850 = vmatprep.subr.mxu0 0.0
    %851 = vmatpush1.xpose.msra.mxu0 0.0
    %852 = vmatprep.subr.mxu0 0.0
    %853 = vmatpush1.xpose.msra.mxu0 0.0
    %854 = vmatprep.subr.mxu0 0.0
    %855 = vmatpush1.xpose.msra.mxu0 0.0
    %856 = vmatprep.subr.mxu0 0.0
    %857 = vmatpush1.xpose.msra.mxu0 0.0
    %858 = vmatprep.subr.mxu0 0.0
    %859 = vmatpush1.xpose.msra.mxu0 0.0
    %860 = vmatprep.subr.mxu0 %v59
    %861 = vmatpush1.xpose.msra.mxu0 %v58
    %862 = vmatprep.subr.mxu0 0.0
    %863 = vmatpush2.xpose.msra.mxu0 0.0
    %864 = vmatprep.subr.mxu0 0.0
    %865 = vmatpush2.xpose.msra.mxu0 0.0
    %866 = vmatprep.subr.mxu0 0.0
    %867 = vmatpush2.xpose.msra.mxu0 0.0
    %868 = vmatprep.subr.mxu0 0.0
    %869 = vmatpush2.xpose.msra.mxu0 0.0
    %870 = vmatprep.subr.mxu0 0.0
    %871 = vmatpush2.xpose.msra.mxu0 0.0
    %872 = vmatprep.subr.mxu0 0.0
    %873 = vmatpush2.xpose.msra.mxu0 0.0
    %874 = vmatprep.subr.mxu0 0.0
    %875 = vmatpush2.xpose.msra.mxu0 0.0
    %876 = vmatprep.subr.mxu0 0.0
    %877 = vmatpush2.xpose.msra.mxu0 0.0
    %878 = vmatprep.subr.mxu0 0.0
    %879 = vmatpush2.xpose.msra.mxu0 0.0
    %880 = vmatprep.subr.mxu0 0.0
    %881 = vmatpush2.xpose.msra.mxu0 0.0
    %882 = vmatprep.subr.mxu0 0.0
    %883 = vmatpush2.xpose.msra.mxu0 0.0
    %884 = vmatprep.subr.mxu0 0.0
    %885 = vmatpush2.xpose.msra.mxu0 0.0
    %886 = vmatprep.subr.mxu0 0.0
    %887 = vmatpush2.xpose.msra.mxu0 0.0
    %888 = vmatprep.subr.mxu0 0.0
    %889 = vmatpush2.xpose.msra.mxu0 0.0
    %890 = vmatprep.subr.mxu0 0.0
    %891 = vmatpush2.xpose.msra.mxu0 0.0
    %892 = vmatprep.subr.mxu0 0.0
    %893 = vmatpush2.xpose.msra.mxu0 0.0
    %894 = vmatprep.mubr.f32.mxu0 %v59
    %895 = vmatmul.mubr.f32.gmra.mxu0 %v58
    %v896 = vpop.f32.mrf.mxu0
    %v897 = vadd.f32 %v827, %v896
    %v898 = vpop.f32.mrf.mxu0
    %899 = vdwg.mxu0
    %p900 = scmp.eq.s32.totalorder 0, 0
    // Predicated region
    $region18: #{tpu_custom_call.1} parent=1 // pred_check
      %p901 = pneg %p900
    $region19: #{tpu_custom_call.1} parent=1 // pred_check_branch
      %903 = sbr.rel (%p901) target = $region21
    $region20: #{tpu_custom_call.1} parent=1 // pred_region
      %vm904 = vcmask 64512
      %905 = vst.msk [vmem:[#allocation2] sm:$0xff] %vm904, %v337
      %906 = vst.msk [vmem:[#allocation3] sm:$0xff] %vm904, %v897
    $region21: #{tpu_custom_call.1} parent=1 // pred_fallthru
      _
    %p907 = scmp.gt.s32.totalorder 0, 0
    // Predicated region
    $region22: #{tpu_custom_call.1} parent=1 // pred_check
      %p908 = pneg %p907
    $region23: #{tpu_custom_call.1} parent=1 // pred_check_branch
      %910 = sbr.rel (%p908) target = $region25
    $region24: #{tpu_custom_call.1} parent=1 // pred_region
      %v911 = vld [vmem:[#allocation2] sm:$0xff]
      %v912 = vadd.f32 %v911, %v337
      %vm913 = vcmask 64512
      %914 = vst.msk [vmem:[#allocation2] sm:$0xff] %vm913, %v912
      %v915 = vld [vmem:[#allocation3] sm:$0xff]
      %v916 = vadd.f32 %v915, %v897
      %917 = vst.msk [vmem:[#allocation3] sm:$0xff] %vm913, %v916
    $region25: #{tpu_custom_call.1} parent=1 // pred_fallthru
      _
    // Predicated region
    $region26: #{tpu_custom_call.1} parent=1 // pred_check
      %p918 = pneg %p900
    $region27: #{tpu_custom_call.1} parent=1 // pred_check_branch
      %920 = sbr.rel (%p918) target = $region29
    $region28: #{tpu_custom_call.1} parent=1 // pred_region
      %v921 = vld [vmem:[#allocation2] sm:$0xff]
      %v922 = vld [vmem:[#allocation3] sm:$0xff]
      %v923 = vmul.f32 %v921, %v921
      %vm924 = vcmask 64512
      %v925 = vsel %vm924, %v923, 0.0
      %926 = vadd.xlane.f32.xlu0 %v925
      %v927 = vpop.xlane.xlu0 %926
      %v928 = vmax.f32 %v927, 1e-24
      %v929 = vrsqrt.pop %v928
      %v930 = vmul.f32 %v921, %v929
      %v931 = vmul.f32 %v922, %v922
      %v932 = vsel %vm924, %v931, 0.0
      %933 = vadd.xlane.f32.xlu0 %v932
      %v934 = vpop.xlane.xlu0 %933
      %v935 = vmax.f32 %v934, 1e-24
      %v936 = vrsqrt.pop %v935
      %v937 = vmul.f32 %v922, %v936
      %v938 = vsub.f32 %v930, %v937
      %v939 = vmul.f32 %v938, %v938
      %v940 = vsel %vm924, %v939, 0.0
      %941 = vadd.xlane.f32.xlu0 %v940
      %v942 = vpop.xlane.xlu0 %941
      %v943 = vrot.slane %v942, 4
      %v944 = vadd.f32 %v942, %v943
      %v945 = vrot.slane %v944, 2
      %v946 = vadd.f32 %v944, %v945
      %v947 = vrot.slane %v946, 1
      %v948 = vadd.f32 %v946, %v947
      %s949 = vtos %v948
      %v950 = vrcp.pop 4.0
      %s951 = vtos %v950
      %s952 = smul.f32 %s949, %s951
      %s953 = scalar_lea.smem [#allocation9], 0
      %954 = sst [smem:[%s953]] %s952
    $region29: #{tpu_custom_call.1} parent=1 // pred_fallthru
      _
    // Predicated region
    $region30: #{tpu_custom_call.1} parent=1 // pred_check
      _
    $region31: #{tpu_custom_call.1} parent=1 // pred_check_branch
      %956 = sbr.rel (0) target = $region33
    $region32: #{tpu_custom_call.1} parent=1 // pred_region
      %s958 = ssub.s32 16, 16
      %959 = vsyncadd [#allocation6], %s958
      %962 = dma.smem_to_hbm [#allocation9], 16, %s2, [#allocation6]
    $region33: #{tpu_custom_call.1} parent=1 // pred_fallthru
      _
    // Predicated region
    $region34: #{tpu_custom_call.1} parent=1 // pred_check
      _
    $region35: #{tpu_custom_call.1} parent=1 // pred_check_branch
      %964 = sbr.rel (0) target = $region37
    $region36: #{tpu_custom_call.1} parent=1 // pred_region
      %965 = dma.done [#allocation6], 16
    $region37: #{tpu_custom_call.1} parent=1 // pred_fallthru
      _
    %966 = sfence
    %967 = vsyncpa [#allocation5], 1
    %968 = vsyncpa [#allocation8], 1
    %969 = vsyncpa [#allocation6], 1

</llo_original>
